<compile_context>
chip_gen: v6e
topology: v6e:2x2x1
jax: 0.10.0
libtpu: 0.0.40
codegen_flags: <defaults>
</compile_context>

<pallas_src>
import functools

import numpy as np
import jax
import jax.numpy as jnp
from jax.experimental import pallas as pl
from jax.experimental.pallas import tpu as pltpu


# --------------------------------------------------------------------------- #
# Pallas kernel: per-(cloud, weight) affinity matrix + scalar triangle count   #
# --------------------------------------------------------------------------- #
def _affinity_kernel(nis_ref, thr_ref, a2_ref, pc_ref, pct_ref,
                     w_ref, tri_ref, *, n_valid, n_dim):
    np_pad = pc_ref.shape[1]          # padded N (multiple of 128)
    w_idx = pl.program_id(1)          # which weight this grid step handles
    neg_inv_sigma = nis_ref[0]        # scalar (SMEM)
    thr = thr_ref[0]                  # scalar (SMEM)

    # rank-D structure of the Gram/distance matrix:
    #   dist_w[i,j] = sum_d alpha_w[d]^2 * (x[i,d] - x[j,d])^2
    # Recomputed per (b, w): D cheap VPU passes, no Np^2 state kept across steps.
    dist = None
    for d in range(n_dim):
        col = pc_ref[0, :, d:d + 1]     # (Np, 1)
        row = pct_ref[0, d:d + 1, :]    # (1, Np)
        diff = col - row                # broadcast -> (Np, Np)
        q = (diff * diff) * a2_ref[w_idx, d]
        dist = q if dist is None else dist + q

    # W = exp(-dist / sigma)   (element-wise math kept in f32: v5e-safe)
    wmat = jnp.exp(dist * neg_inv_sigma)

    ii = jax.lax.broadcasted_iota(jnp.int32, (np_pad, np_pad), 0)
    jj = jax.lax.broadcasted_iota(jnp.int32, (np_pad, np_pad), 1)
    offdiag = ii != jj
    if n_valid < np_pad:
        valid = (ii < n_valid) & (jj < n_valid)
        wmat = jnp.where(valid, wmat, 0.0)           # padded rows/cols -> 0
        adj_mask = (wmat >= thr) & offdiag & valid   # boolean masking only
    else:
        adj_mask = (wmat >= thr) & offdiag

    w_ref[0, 0] = wmat

    # Scalar triangle count: trace(A^3)/6, with A the 0/1 symmetric adjacency.
    # bf16 inputs are MXU-native on all generations; 0/1 values with f32
    # accumulation keep the count exact.  Only a scalar is written back.
    adj_bf16 = adj_mask.astype(jnp.bfloat16)
    aa = jax.lax.dot_general(adj_bf16, adj_bf16, (((1,), (0,)), ((), ())),
                             preferred_element_type=jnp.float32)
    tri6 = jnp.sum(jnp.where(adj_mask, aa, 0.0), axis=(0, 1), keepdims=True)
    tri_ref[0, 0] = tri6 * (1.0 / 6.0)


def simplicial_affinity(pcs, alphas, sigma, threshold):
    """pcs: (B, N, D) f32, alphas: (Wn, D) f32 -> (W, triangle_counts).

    W:   (B, Wn, N, N) affinity  exp(-||alpha_w ⊙ (x_i - x_j)||^2 / sigma)
    tri: (B, Wn)       triangle counts of the thresholded off-diagonal adjacency.
    """
    B, N, D = pcs.shape
    Wn = alphas.shape[0]

    # pad N to a lane-dense multiple of 128; pad the feature dim to 8 sublanes
    Np = max(128, -(-N // 128) * 128)
    Ds = 8

    pcs_f32 = pcs.astype(jnp.float32)
    pc_p = jnp.zeros((B, Np, Ds), jnp.float32).at[:, :N, :D].set(pcs_f32)
    pct_p = jnp.zeros((B, Ds, Np), jnp.float32).at[:, :D, :N].set(
        jnp.swapaxes(pcs_f32, 1, 2))
    a2 = (alphas * alphas).astype(jnp.float32)                 # (Wn, D) in SMEM
    nis = jnp.full((1,), -1.0 / float(sigma), jnp.float32)
    thr = jnp.full((1,), float(threshold), jnp.float32)

    kernel = functools.partial(_affinity_kernel, n_valid=N, n_dim=D)

    out_shape = (
        jax.ShapeDtypeStruct((B, Wn, Np, Np), jnp.float32),    # W affinity
        jax.ShapeDtypeStruct((B, Wn, 1, 1), jnp.float32),      # triangle counts
    )
    in_specs = [
        pl.BlockSpec(memory_space=pltpu.MemorySpace.SMEM),     # -1/sigma
        pl.BlockSpec(memory_space=pltpu.MemorySpace.SMEM),     # threshold
        pl.BlockSpec(memory_space=pltpu.MemorySpace.SMEM),     # alphas^2
        pl.BlockSpec((1, Np, Ds), lambda b, w: (b, 0, 0)),     # point cloud
        pl.BlockSpec((1, Ds, Np), lambda b, w: (b, 0, 0)),     # point cloud^T
    ]
    out_specs = (
        pl.BlockSpec((1, 1, Np, Np), lambda b, w: (b, w, 0, 0)),
        pl.BlockSpec((1, 1, 1, 1), lambda b, w: (b, w, 0, 0)),
    )

    # VMEM budget: W block double-buffered + dist/wmat/adj/aa/mask temporaries.
    tile_bytes = Np * Np * 4
    need = 2 * tile_bytes + (D + 6) * tile_bytes + (1 << 20)
    try:
        info = pltpu.get_tpu_info()
        cap = int(getattr(info, "vmem_capacity_bytes", 64 << 20))
    except Exception:  # pragma: no cover - conservative fallback (v7x size)
        cap = 64 << 20
    vmem_limit = int(min(max(need, 32 << 20), int(cap * 0.9)))

    wmat, tri = pl.pallas_call(
        kernel,
        out_shape=out_shape,
        grid=(B, Wn),
        in_specs=in_specs,
        out_specs=out_specs,
        compiler_params=pltpu.CompilerParams(
            dimension_semantics=("parallel", "parallel"),
            vmem_limit_bytes=vmem_limit),
    )(nis, thr, a2, pc_p, pct_p)

    return wmat[..., :N, :N], tri[..., 0, 0]


# --------------------------------------------------------------------------- #
# Host-side graph / simplicial-complex assembly (dynamic shapes, Python sets)  #
# --------------------------------------------------------------------------- #
def assemble_simplicial_graph(Xn, Wm, tri_counts, threshold, n_weights):
    Xn = np.asarray(Xn)
    Wm = np.asarray(Wm)
    tri_counts = np.asarray(tri_counts)
    B, Wn, N, dim = Xn.shape

    all_edge_indices, all_edge_weights, all_features, batch = [], [], [], []
    node_offset = 0

    for p in range(B):
        for w in range(Wn):
            Wmat = Wm[p, w]
            mask = Wmat >= threshold          # recomputed on host from W
            X_nodes = Xn[p, w]

            i_idx, j_idx = np.where(mask)     # includes self-loops
            # NOTE: the PyTorch reference appends the edge list twice — once with
            # local node indices here, and once offset by base_nodes below.  We
            # mirror that behaviour for semantic fidelity.
            all_edge_indices.append(np.stack([i_idx, j_idx]))
            edge_weights_ij = Wmat[i_idx, j_idx]
            all_edge_weights.append(edge_weights_ij)
            num_edges = i_idx.shape[0]

            neighbors = [set() for _ in range(N)]
            for i, j in zip(i_idx.tolist(), j_idx.tolist()):
                if i < j:
                    neighbors[i].add(j)
                    neighbors[j].add(i)

            triangles = []
            for i in range(N):
                for j in sorted(neighbors[i]):
                    if j > i:
                        common = neighbors[i] & neighbors[j]
                        for k in sorted(common):
                            if k > j:
                                triangles.append((i, j, k))

            # consistency check against the kernel's in-kernel trace(A^3)/6
            assert int(round(float(tri_counts[p, w]))) == len(triangles)

            valid_tri = (np.array(triangles, dtype=np.int64)[:1000]
                         if triangles else np.zeros((0, 3), np.int64))
            num_tri = valid_tri.shape[0]

            X_edges = 0.5 * (X_nodes[i_idx] + X_nodes[j_idx])
            if num_tri > 0:
                X_tri = (X_nodes[valid_tri[:, 0]] + X_nodes[valid_tri[:, 1]]
                         + X_nodes[valid_tri[:, 2]]) / 3.0
            else:
                X_tri = np.zeros((0, dim), np.float32)

            tetrahedra = []
            for (i, j, k) in triangles:
                common = neighbors[i] & neighbors[j] & neighbors[k]
                for l in sorted(common):
                    if l > k:
                        tetrahedra.append((i, j, k, l))
            valid_tetra = (np.array(tetrahedra, dtype=np.int64)
                           if tetrahedra else np.zeros((0, 4), np.int64))
            num_tetra = valid_tetra.shape[0]
            if num_tetra > 0:
                X_tetra = (X_nodes[valid_tetra[:, 0]] + X_nodes[valid_tetra[:, 1]]
                           + X_nodes[valid_tetra[:, 2]] + X_nodes[valid_tetra[:, 3]]) / 4.0
            else:
                X_tetra = np.zeros((0, dim), np.float32)

            X_bar = np.concatenate([X_nodes, X_edges, X_tri, X_tetra], axis=0)

            # (the torch code also builds `edge_pairs`, which is never used downstream)

            tri_index = {frozenset(t): k for k, t in enumerate(valid_tri.tolist())}
            tri_pairs = []
            tkeys = list(tri_index.keys())
            for t1 in tkeys:
                for t2 in tkeys:
                    if len(t1 & t2) == 2:
                        tri_pairs.append([tri_index[t1], tri_index[t2]])
                        tri_pairs.append([tri_index[t2], tri_index[t1]])

            base_nodes = node_offset
            base_edges = node_offset + N
            base_tris = base_edges + num_edges
            base_tetra = base_tris + num_tri

            all_edge_indices.append(np.stack([i_idx, j_idx]) + base_nodes)
            all_edge_weights.append(edge_weights_ij)
            if num_tri and len(tri_pairs) > 0:
                tp = np.array(tri_pairs, dtype=np.int64)
                all_edge_indices.append(tp.T + base_tris)
                all_edge_weights.append(np.ones(len(tri_pairs), np.float32))

            all_features.append(X_bar.astype(np.float32))

            tetra_index = {frozenset(q): idx for idx, q in enumerate(valid_tetra.tolist())}
            tetra_pairs = []
            qkeys = list(tetra_index.keys())
            for t1 in qkeys:
                for t2 in qkeys:
                    if t1 != t2 and len(t1 & t2) == 3:
                        tetra_pairs.append([tetra_index[t1], tetra_index[t2]])
            if len(tetra_pairs) > 0:
                tpt = np.array(tetra_pairs, dtype=np.int64) + base_tetra
                all_edge_indices.append(tpt.T)
                all_edge_weights.append(np.ones(tpt.shape[0], np.float32))

            n_total = N + num_edges + num_tri + num_tetra
            batch.extend([p * n_weights + w] * n_total)
            node_offset += n_total

    edge_index_cat = (np.concatenate(all_edge_indices, axis=1)
                      if all_edge_indices else np.zeros((2, 0), np.int64))
    edge_weight_cat = (np.concatenate(all_edge_weights, axis=0)
                       if all_edge_weights else np.zeros((0,), np.float32))
    X_cat = (np.concatenate(all_features, axis=0)
             if all_features else np.zeros((0, dim), np.float32))
    batch = np.array(batch, dtype=np.int64)
    return X_cat, edge_index_cat, edge_weight_cat, batch


def simplicial_feat_learning_layer_tetra_forward(point_clouds, sigma, alphas, threshold):
    """point_clouds: (B, N, D) jnp array (all clouds share N)."""
    n_weights = alphas.shape[0]
    # X_nodes = pc * alpha_w is a trivial broadcast; let XLA fuse it (kept out
    # of the kernel to avoid an 8-lane-wide HBM writeback stream).
    Xn = point_clouds[:, None, :, :] * alphas[None, :, None, :]
    Wm, tri = simplicial_affinity(point_clouds, alphas, sigma, threshold)
    jax.block_until_ready((Xn, Wm, tri))
    X_cat, edge_index, edge_weight, batch = assemble_simplicial_graph(
        Xn, Wm, tri, threshold, n_weights)
    # TODO(synk): apply GraphWaveletTransform(edge_index, edge_weight, X_cat, J=3)
    #             .generate_timepoint_features(batch) — class not provided in source.
    return X_cat, edge_index, edge_weight, batch


# --------------------------------------------------------------------------- #
# Demo / self-check                                                            #
# --------------------------------------------------------------------------- #
if __name__ == "__main__":
    B_pc, N_pts, dim, n_weights = 2, 12, 3, 4
    sigma, threshold = 1.0, 0.5

    key = jax.random.PRNGKey(0)
    k_pc, k_alpha = jax.random.split(key)
    point_clouds = jax.random.uniform(k_pc, (B_pc, N_pts, dim), jnp.float32)
    # nn.Parameter(torch.rand((n_weights, dimension)))  ->  uniform [0, 1)
    alphas = jax.random.uniform(k_alpha, (n_weights, dim), jnp.float32)

    # run the Pallas kernel
    Wm, tri = simplicial_affinity(point_clouds, alphas, sigma, threshold)
    jax.block_until_ready((Wm, tri))

    # pure-JAX reference for the kernel's dense hot path (Gram-matrix form, as
    # in the PyTorch compute_dist)
    X_ref = point_clouds[:, None, :, :] * alphas[None, :, None, :]
    G_ref = jnp.einsum("bwnd,bwmd->bwnm", X_ref, X_ref)
    diag = jnp.einsum("bwnd,bwnd->bwn", X_ref, X_ref)
    D_ref = diag[:, :, :, None] + diag[:, :, None, :] - 2.0 * G_ref
    W_ref = jnp.exp(-D_ref / sigma)
    assert np.allclose(np.asarray(Wm), np.asarray(W_ref), atol=1e-4, rtol=1e-4)

    # triangle-count output check: trace(A^3)/6 of the thresholded adjacency
    adj_np = (np.asarray(Wm) >= threshold).astype(np.float64)
    adj_np = adj_np * (1.0 - np.eye(N_pts))
    tri_host = np.einsum("bwij,bwjk,bwki->bw", adj_np, adj_np, adj_np) / 6.0
    assert np.allclose(np.asarray(tri), tri_host, atol=1e-3)

    # full forward up to the (undefined) GraphWaveletTransform
    X_cat, edge_index, edge_weight, batch = simplicial_feat_learning_layer_tetra_forward(
        point_clouds, sigma, alphas, threshold)

    assert X_cat.shape[1] == dim
    assert edge_index.shape[0] == 2
    assert edge_weight.shape[0] == edge_index.shape[1]
    assert batch.shape[0] == X_cat.shape[0]

    print("KERNEL_OK")
</pallas_src>

<mosaic_0001>
module attributes {stable_mosaic.version = 11 : i64} {
  func.func @_affinity_kernel(%arg0: i32, %arg1: i32, %arg2: memref<1xf32, #tpu.memory_space<smem>>, %arg3: memref<1xf32, #tpu.memory_space<smem>>, %arg4: memref<4x3xf32, #tpu.memory_space<smem>>, %arg5: memref<1x128x8xf32, #tpu.memory_space<vmem>>, %arg6: memref<1x8x128xf32, #tpu.memory_space<vmem>>, %arg7: memref<1x1x128x128xf32, #tpu.memory_space<vmem>>, %arg8: memref<1x1x1x1xf32, #tpu.memory_space<vmem>>) attributes {dimension_semantics = [#tpu.dimension_semantics<parallel>, #tpu.dimension_semantics<parallel>], iteration_bounds = array<i64: 2, 4>, scalar_prefetch = 0 : i64, scratch_operands = 0 : i64, tpu.core_type = #tpu.core_type<tc>, window_params = [{transform_indices = @transform_0, window_bounds = array<i64: 1>}, {transform_indices = @transform_1, window_bounds = array<i64: 1>}, {transform_indices = @transform_2, window_bounds = array<i64: 4, 3>}, {transform_indices = @transform_3, window_bounds = array<i64: 1, 128, 8>}, {transform_indices = @transform_4, window_bounds = array<i64: 1, 8, 128>}, {transform_indices = @transform_5, window_bounds = array<i64: 1, 1, 128, 128>}, {transform_indices = @transform_6, window_bounds = array<i64: 1, 1, 1, 1>}]} {
    %c0 = arith.constant 0 : index
    %0 = memref.load %arg2[%c0] : memref<1xf32, #tpu.memory_space<smem>>
    %c0_0 = arith.constant 0 : index
    %1 = memref.load %arg3[%c0_0] : memref<1xf32, #tpu.memory_space<smem>>
    %c0_1 = arith.constant 0 : index
    %c0_2 = arith.constant 0 : index
    %c0_3 = arith.constant 0 : index
    %2 = vector.load %arg5[%c0_1, %c0_2, %c0_3] : memref<1x128x8xf32, #tpu.memory_space<vmem>>, vector<1x128x1xf32>
    %3 = vector.shape_cast %2 : vector<1x128x1xf32> to vector<128x1xf32>
    %c0_4 = arith.constant 0 : index
    %c0_5 = arith.constant 0 : index
    %c0_6 = arith.constant 0 : index
    %4 = vector.load %arg6[%c0_4, %c0_5, %c0_6] : memref<1x8x128xf32, #tpu.memory_space<vmem>>, vector<1x1x128xf32>
    %5 = vector.shape_cast %4 : vector<1x1x128xf32> to vector<1x128xf32>
    %6 = vector.broadcast %3 : vector<128x1xf32> to vector<128x128xf32>
    %7 = vector.broadcast %5 : vector<1x128xf32> to vector<128x128xf32>
    %8 = arith.subf %6, %7 : vector<128x128xf32>
    %9 = arith.mulf %8, %8 : vector<128x128xf32>
    %10 = arith.index_cast %arg1 : i32 to index
    %c0_7 = arith.constant 0 : index
    %11 = memref.load %arg4[%10, %c0_7] : memref<4x3xf32, #tpu.memory_space<smem>>
    %12 = vector.broadcast %11 : f32 to vector<128x128xf32>
    %13 = arith.mulf %9, %12 : vector<128x128xf32>
    %c0_8 = arith.constant 0 : index
    %c0_9 = arith.constant 0 : index
    %c1 = arith.constant 1 : index
    %14 = vector.load %arg5[%c0_8, %c0_9, %c1] : memref<1x128x8xf32, #tpu.memory_space<vmem>>, vector<1x128x1xf32>
    %15 = vector.shape_cast %14 : vector<1x128x1xf32> to vector<128x1xf32>
    %c0_10 = arith.constant 0 : index
    %c1_11 = arith.constant 1 : index
    %c0_12 = arith.constant 0 : index
    %16 = vector.load %arg6[%c0_10, %c1_11, %c0_12] : memref<1x8x128xf32, #tpu.memory_space<vmem>>, vector<1x1x128xf32>
    %17 = vector.shape_cast %16 : vector<1x1x128xf32> to vector<1x128xf32>
    %18 = vector.broadcast %15 : vector<128x1xf32> to vector<128x128xf32>
    %19 = vector.broadcast %17 : vector<1x128xf32> to vector<128x128xf32>
    %20 = arith.subf %18, %19 : vector<128x128xf32>
    %21 = arith.mulf %20, %20 : vector<128x128xf32>
    %22 = arith.index_cast %arg1 : i32 to index
    %c1_13 = arith.constant 1 : index
    %23 = memref.load %arg4[%22, %c1_13] : memref<4x3xf32, #tpu.memory_space<smem>>
    %24 = vector.broadcast %23 : f32 to vector<128x128xf32>
    %25 = arith.mulf %21, %24 : vector<128x128xf32>
    %26 = arith.addf %13, %25 : vector<128x128xf32>
    %c0_14 = arith.constant 0 : index
    %c0_15 = arith.constant 0 : index
    %c2 = arith.constant 2 : index
    %27 = vector.load %arg5[%c0_14, %c0_15, %c2] : memref<1x128x8xf32, #tpu.memory_space<vmem>>, vector<1x128x1xf32>
    %28 = vector.shape_cast %27 : vector<1x128x1xf32> to vector<128x1xf32>
    %c0_16 = arith.constant 0 : index
    %c2_17 = arith.constant 2 : index
    %c0_18 = arith.constant 0 : index
    %29 = vector.load %arg6[%c0_16, %c2_17, %c0_18] : memref<1x8x128xf32, #tpu.memory_space<vmem>>, vector<1x1x128xf32>
    %30 = vector.shape_cast %29 : vector<1x1x128xf32> to vector<1x128xf32>
    %31 = vector.broadcast %28 : vector<128x1xf32> to vector<128x128xf32>
    %32 = vector.broadcast %30 : vector<1x128xf32> to vector<128x128xf32>
    %33 = arith.subf %31, %32 : vector<128x128xf32>
    %34 = arith.mulf %33, %33 : vector<128x128xf32>
    %35 = arith.index_cast %arg1 : i32 to index
    %c2_19 = arith.constant 2 : index
    %36 = memref.load %arg4[%35, %c2_19] : memref<4x3xf32, #tpu.memory_space<smem>>
    %37 = vector.broadcast %36 : f32 to vector<128x128xf32>
    %38 = arith.mulf %34, %37 : vector<128x128xf32>
    %39 = arith.addf %26, %38 : vector<128x128xf32>
    %40 = vector.broadcast %0 : f32 to vector<128x128xf32>
    %41 = arith.mulf %39, %40 : vector<128x128xf32>
    %42 = math.exp %41 : vector<128x128xf32>
    %43 = tpu.iota {dimensions = array<i32: 0>} : vector<128x128xi32>
    %44 = tpu.iota {dimensions = array<i32: 1>} : vector<128x128xi32>
    %45 = arith.cmpi ne, %43, %44 : vector<128x128xi32>
    %c12_i32 = arith.constant 12 : i32
    %46 = vector.broadcast %c12_i32 : i32 to vector<128x128xi32>
    %47 = arith.cmpi slt, %43, %46 : vector<128x128xi32>
    %c12_i32_20 = arith.constant 12 : i32
    %48 = vector.broadcast %c12_i32_20 : i32 to vector<128x128xi32>
    %49 = arith.cmpi slt, %44, %48 : vector<128x128xi32>
    %50 = arith.andi %47, %49 : vector<128x128xi1>
    %cst = arith.constant 0.000000e+00 : f32
    %51 = vector.broadcast %cst : f32 to vector<128x128xf32>
    %52 = arith.select %50, %42, %51 : vector<128x128xi1>, vector<128x128xf32>
    %53 = vector.broadcast %1 : f32 to vector<128x128xf32>
    %54 = arith.cmpf oge, %52, %53 : vector<128x128xf32>
    %55 = arith.andi %54, %45 : vector<128x128xi1>
    %56 = arith.andi %55, %50 : vector<128x128xi1>
    %c0_21 = arith.constant 0 : index
    %c0_22 = arith.constant 0 : index
    %c0_23 = arith.constant 0 : index
    %c0_24 = arith.constant 0 : index
    %57 = vector.load %arg7[%c0_21, %c0_22, %c0_23, %c0_24] : memref<1x1x128x128xf32, #tpu.memory_space<vmem>>, vector<1x1x128x128xf32>
    %58 = vector.shape_cast %57 : vector<1x1x128x128xf32> to vector<128x128xf32>
    %59 = vector.shape_cast %52 : vector<128x128xf32> to vector<1x1x128x128xf32>
    tpu.vector_store %arg7[%c0_21, %c0_22, %c0_23, %c0_24], %59 {strides = array<i32>} : memref<1x1x128x128xf32, #tpu.memory_space<vmem>>, vector<1x1x128x128xf32>,
    %60 = arith.extui %56 : vector<128x128xi1> to vector<128x128xi32>
    %61 = arith.sitofp %60 : vector<128x128xi32> to vector<128x128xf32>
    %62 = arith.truncf %61 : vector<128x128xf32> to vector<128x128xbf16>
    %cst_25 = arith.constant dense<0.000000e+00> : vector<128x128xf32>
    %63 = tpu.matmul %62, %62, %cst_25 {dimension_numbers = #tpu.dot_dimension_numbers<[1], [0], [0], [1], [0, 0, 1, 1], [], []>} : vector<128x128xbf16>, vector<128x128xbf16>, vector<128x128xf32> -> vector<128x128xf32>
    %cst_26 = arith.constant 0.000000e+00 : f32
    %64 = vector.broadcast %cst_26 : f32 to vector<128x128xf32>
    %65 = arith.select %56, %63, %64 : vector<128x128xi1>, vector<128x128xf32>
    %66 = vector.shape_cast %65 : vector<128x128xf32> to vector<1x128x128xf32>
    %cst_27 = arith.constant dense<0.000000e+00> : vector<1xf32>
    %67 = vector.multi_reduction <add>, %66, %cst_27 [1, 2] : vector<1x128x128xf32> to vector<1xf32>
    %68 = vector.shape_cast %67 : vector<1xf32> to vector<1x1x1xf32>
    %69 = vector.extract %68[0, 0, 0] : f32 from vector<1x1x1xf32>
    %70 = vector.broadcast %69 : f32 to vector<1x1xf32>
    %cst_28 = arith.constant 0.166666672 : f32
    %71 = vector.broadcast %cst_28 : f32 to vector<1x1xf32>
    %72 = arith.mulf %70, %71 : vector<1x1xf32>
    %c0_29 = arith.constant 0 : index
    %c0_30 = arith.constant 0 : index
    %c0_31 = arith.constant 0 : index
    %c0_32 = arith.constant 0 : index
    %73 = vector.load %arg8[%c0_29, %c0_30, %c0_31, %c0_32] : memref<1x1x1x1xf32, #tpu.memory_space<vmem>>, vector<1x1x1x1xf32>
    %74 = vector.shape_cast %73 : vector<1x1x1x1xf32> to vector<1x1xf32>
    %75 = vector.shape_cast %72 : vector<1x1xf32> to vector<1x1x1x1xf32>
    tpu.vector_store %arg8[%c0_29, %c0_30, %c0_31, %c0_32], %75 {strides = array<i32>} : memref<1x1x1x1xf32, #tpu.memory_space<vmem>>, vector<1x1x1x1xf32>,
    return
  }
  func.func @transform_0(%arg0: i32, %arg1: i32) -> i32 {
    %c0_i32 = arith.constant 0 : i32
    %c0_i32_0 = arith.constant 0 : i32
    return %c0_i32 : i32
  }
  func.func @transform_1(%arg0: i32, %arg1: i32) -> i32 {
    %c0_i32 = arith.constant 0 : i32
    %c0_i32_0 = arith.constant 0 : i32
    return %c0_i32 : i32
  }
  func.func @transform_2(%arg0: i32, %arg1: i32) -> (i32, i32) {
    %c0_i32 = arith.constant 0 : i32
    %c0_i32_0 = arith.constant 0 : i32
    %c0_i32_1 = arith.constant 0 : i32
    return %c0_i32, %c0_i32_0 : i32, i32
  }
  func.func @transform_3(%arg0: i32, %arg1: i32) -> (i32, i32, i32) {
    %c0_i32 = arith.constant 0 : i32
    %c0_i32_0 = arith.constant 0 : i32
    %c0_i32_1 = arith.constant 0 : i32
    return %arg0, %c0_i32, %c0_i32_0 : i32, i32, i32
  }
  func.func @transform_4(%arg0: i32, %arg1: i32) -> (i32, i32, i32) {
    %c0_i32 = arith.constant 0 : i32
    %c0_i32_0 = arith.constant 0 : i32
    %c0_i32_1 = arith.constant 0 : i32
    return %arg0, %c0_i32, %c0_i32_0 : i32, i32, i32
  }
  func.func @transform_5(%arg0: i32, %arg1: i32) -> (i32, i32, i32, i32) {
    %c0_i32 = arith.constant 0 : i32
    %c0_i32_0 = arith.constant 0 : i32
    %c0_i32_1 = arith.constant 0 : i32
    return %arg0, %arg1, %c0_i32, %c0_i32_0 : i32, i32, i32, i32
  }
  func.func @transform_6(%arg0: i32, %arg1: i32) -> (i32, i32, i32, i32) {
    %c0_i32 = arith.constant 0 : i32
    %c0_i32_0 = arith.constant 0 : i32
    %c0_i32_1 = arith.constant 0 : i32
    return %arg0, %arg1, %c0_i32, %c0_i32_0 : i32, i32, i32, i32
  }
}

</mosaic_0001>

<llo_original>
// kernel: tpu_custom_call.1
$region0: #{tpu_custom_call.1}
  #allocation0 [shape = 'u32[]', space=smem, size = 0x4, offset = 0x4, fixed_abs, tag = 'smem constant byte address 0x4 - core index']
  #allocation1 [shape = 'u32[144,128]{1,0:T(1,128)}', space=vmem, size = 0x12000, scoped, tag = 'internal scratch']
  #allocation2 [shape = 'f32[1]{0:T(128)S(6)}', space=smem, size = 0x200, scoped, tag = 'scoped memory for tpu_custom_call.1']
  #allocation3 [shape = 'f32[1]{0:T(128)S(6)}', space=smem, size = 0x200, scoped, tag = 'scoped memory for tpu_custom_call.1']
  %s0 = inlined_call_operand.<no memory space> [shape: f32[1], index: 0, kind: input, shape index: {}]
  %s1 = inlined_call_operand.<no memory space> [shape: f32[1], index: 1, kind: input, shape index: {}]
  %s2 = inlined_call_operand.vmem [shape: f32[4,3], index: 2, kind: input, shape index: {}]
  %s3 = inlined_call_operand.vmem [shape: f32[2,128,8], index: 3, kind: input, shape index: {}]
  %s4 = inlined_call_operand.vmem [shape: f32[2,8,128], index: 4, kind: input, shape index: {}]
  %s5 = inlined_call_operand.hbm [shape: f32[2,4,128,128], index: 5, kind: output, shape index: {0}]
  %s6 = inlined_call_operand.vmem [shape: f32[2,4,1,1], index: 6, kind: output, shape index: {1}]
  %7 = xla_tuple %s5, %s6
  %s8 = sld [smem:[#allocation0]]
  $region65: #{tpu_custom_call.1} parent=0
    _
  %s10 = ssub.s32 1, %s8
  %s11 = scalar_select 0, %s10, %s8
  %12 = sst [smem:[#allocation2]] %s0
  %13 = sst [smem:[#allocation3]] %s1
  $region1: #{tpu_custom_call.1} parent=0
    #allocation4 [shape = 'u8[2048]{0}', space=smem, size = 0x800, scoped, tag = 'input window, operand 2, single buffered']
    #allocation5 [shape = 's32[2]{0}', space=sflag, size = 0x8, scoped, tag = 'scoped memory for tpu_custom_call.1']
    #allocation6 [shape = 's32[2]{0}', space=sflag, size = 0x8, scoped, tag = 'scoped memory for tpu_custom_call.1']
    #allocation7 [shape = 'u8[131072]{0}', space=vmem, size = 0x20000, scoped, tag = 'output window, operand 0']
    %14 = vsyncpa [#allocation6], 0
    %15 = vsyncpa [#allocation5], 0
    %s16 = scalar_lea.sflag [#allocation5], 1
    %17 = vsyncpa %s16, 0
    loop: start=0, step=1, limit=10
    $region2: #{tpu_custom_call.1} parent=1 // loop_pre_header
      _
    $region3: #{tpu_custom_call.1} parent=1 // loop_header
      %s19 = sphi 0, %s23
      %p20 = scmp.ge.s32.totalorder %s19, 10
      %s26 = sphi 0, %s38
      %s27 = sphi 0, %s34
      %s28 = sphi 0, %s26
      %s29 = sphi 0, %s27
      %s30 = sphi 0, %s28
      %s31 = sphi 0, %s29
      %s39 = sphi 0, %s39
      %s41 = sphi 0, %s39
      %s42 = sphi 0, %s41
      %s56 = sphi 0, %s42
      %s60 = sphi 0, %s60
      %s62 = sphi 0, %s60
      %s63 = sphi 0, %s62
      %s77 = sphi 0, %s63
      %s81 = sphi 0, %s81
      %s83 = sphi 0, %s81
      %s84 = sphi 0, %s83
      %s98 = sphi 0, %s84
      %s104 = sphi 0, %s106
      %s107 = sphi 0, %s104
      %s108 = sphi 0, %s107
      %s124 = sphi 0, %s108
      %s130 = sphi 0, %s132
      %s133 = sphi 0, %s130
      %s134 = sphi 0, %s133
      %s150 = sphi 0, %s134
      %s158 = sphi 0, %s160
      %s161 = sphi 0, %s158
      %s162 = sphi 0, %s161
      %s178 = sphi 0, %s162
      %s186 = sphi 0, %s188
      %s189 = sphi 0, %s186
      %s190 = sphi 0, %s189
      %s206 = sphi 0, %s190
    $region4: #{tpu_custom_call.1} parent=1 // loop_header_branch
      %22 = sbr.rel (%p20) target = $region8
    $region5: #{tpu_custom_call.1} parent=1 // loop_body
      %s24 = ssub.s32 %s19, 1
      %s25 = ssub.s32 %s19, 2
      %s32 = sadd.s32 1, %s27
      %p33 = scmp.ge.s32.totalorder %s32, 4
      %s34 = scalar_select %p33, 0, %s32
      %s35 = sadd.s32 1, %s26
      %s36 = scalar_select %p33, %s35, %s26
      %p37 = scmp.ge.s32.totalorder %s36, 2
      %s38 = scalar_select %p37, 0, %s36
      %s40 = sadd.s32 %s39, 1
      %p43 = scmp.eq.s32.totalorder %s19, 7
      %p44 = scmp.ne.s32.totalorder %s39, %s41
      %p45 = scmp.eq.s32.totalorder %s19, 0
      %p46 = por %p44, %p45
      %p47 = scmp.ne.s32.totalorder %s39, %s41
      %p48 = scmp.eq.s32.totalorder %s24, 7
      %p49 = por %p47, %p48
      %p50 = scmp.ne.s32.totalorder %s41, %s42
      %p51 = scmp.eq.s32.totalorder %s24, 0
      %p52 = por %p50, %p51
      %p53 = scmp.ne.s32.totalorder %s41, %s42
      %p54 = scmp.eq.s32.totalorder %s25, 7
      %p55 = por %p53, %p54
      %p57 = scmp.ne.s32.totalorder %s42, %s56
      %p58 = scmp.eq.s32.totalorder %s25, 0
      %p59 = por %p57, %p58
      %s61 = sadd.s32 %s60, 1
      %p64 = scmp.eq.s32.totalorder %s19, 7
      %p65 = scmp.ne.s32.totalorder %s60, %s62
      %p66 = scmp.eq.s32.totalorder %s19, 0
      %p67 = por %p65, %p66
      %p68 = scmp.ne.s32.totalorder %s60, %s62
      %p69 = scmp.eq.s32.totalorder %s24, 7
      %p70 = por %p68, %p69
      %p71 = scmp.ne.s32.totalorder %s62, %s63
      %p72 = scmp.eq.s32.totalorder %s24, 0
      %p73 = por %p71, %p72
      %p74 = scmp.ne.s32.totalorder %s62, %s63
      %p75 = scmp.eq.s32.totalorder %s25, 7
      %p76 = por %p74, %p75
      %p78 = scmp.ne.s32.totalorder %s63, %s77
      %p79 = scmp.eq.s32.totalorder %s25, 0
      %p80 = por %p78, %p79
      %s82 = sadd.s32 %s81, 1
      %p85 = scmp.eq.s32.totalorder %s19, 7
      %p86 = scmp.ne.s32.totalorder %s81, %s83
      %p87 = scmp.eq.s32.totalorder %s19, 0
      %p88 = por %p86, %p87
      %p89 = scmp.ne.s32.totalorder %s81, %s83
      %p90 = scmp.eq.s32.totalorder %s24, 7
      %p91 = por %p89, %p90
      %p92 = scmp.ne.s32.totalorder %s83, %s84
      %p93 = scmp.eq.s32.totalorder %s24, 0
      %p94 = por %p92, %p93
      %p95 = scmp.ne.s32.totalorder %s83, %s84
      %p96 = scmp.eq.s32.totalorder %s25, 7
      %p97 = por %p95, %p96
      %p99 = scmp.ne.s32.totalorder %s84, %s98
      %p100 = scmp.eq.s32.totalorder %s25, 0
      %p101 = por %p99, %p100
      %s102 = ssub.s32 %s26, %s38
      %p103 = scmp.eq.s32.totalorder %s102, 0
      %s105 = sadd.s32 %s104, 1
      %s106 = scalar_select %p103, %s104, %s105
      %p109 = pneg %p103
      %p110 = scmp.eq.s32.totalorder %s19, 7
      %p111 = por %p109, %p110
      %p112 = scmp.ne.s32.totalorder %s104, %s107
      %p113 = scmp.eq.s32.totalorder %s19, 0
      %p114 = por %p112, %p113
      %p115 = scmp.ne.s32.totalorder %s104, %s107
      %p116 = scmp.eq.s32.totalorder %s24, 7
      %p117 = por %p115, %p116
      %p118 = scmp.ne.s32.totalorder %s107, %s108
      %p119 = scmp.eq.s32.totalorder %s24, 0
      %p120 = por %p118, %p119
      %p121 = scmp.ne.s32.totalorder %s107, %s108
      %p122 = scmp.eq.s32.totalorder %s25, 7
      %p123 = por %p121, %p122
      %p125 = scmp.ne.s32.totalorder %s108, %s124
      %p126 = scmp.eq.s32.totalorder %s25, 0
      %p127 = por %p125, %p126
      %s128 = ssub.s32 %s26, %s38
      %p129 = scmp.eq.s32.totalorder %s128, 0
      %s131 = sadd.s32 %s130, 1
      %s132 = scalar_select %p129, %s130, %s131
      %p135 = pneg %p129
      %p136 = scmp.eq.s32.totalorder %s19, 7
      %p137 = por %p135, %p136
      %p138 = scmp.ne.s32.totalorder %s130, %s133
      %p139 = scmp.eq.s32.totalorder %s19, 0
      %p140 = por %p138, %p139
      %p141 = scmp.ne.s32.totalorder %s130, %s133
      %p142 = scmp.eq.s32.totalorder %s24, 7
      %p143 = por %p141, %p142
      %p144 = scmp.ne.s32.totalorder %s133, %s134
      %p145 = scmp.eq.s32.totalorder %s24, 0
      %p146 = por %p144, %p145
      %p147 = scmp.ne.s32.totalorder %s133, %s134
      %p148 = scmp.eq.s32.totalorder %s25, 7
      %p149 = por %p147, %p148
      %p151 = scmp.ne.s32.totalorder %s134, %s150
      %p152 = scmp.eq.s32.totalorder %s25, 0
      %p153 = por %p151, %p152
      %s154 = ssub.s32 %s26, %s38
      %s155 = ssub.s32 %s27, %s34
      %s156 = sor.u32 %s154, %s155
      %p157 = scmp.eq.s32.totalorder %s156, 0
      %s159 = sadd.s32 %s158, 1
      %s160 = scalar_select %p157, %s158, %s159
      %p163 = pneg %p157
      %p164 = scmp.eq.s32.totalorder %s19, 7
      %p165 = por %p163, %p164
      %p166 = scmp.ne.s32.totalorder %s158, %s161
      %p167 = scmp.eq.s32.totalorder %s19, 0
      %p168 = por %p166, %p167
      %p169 = scmp.ne.s32.totalorder %s158, %s161
      %p170 = scmp.eq.s32.totalorder %s24, 7
      %p171 = por %p169, %p170
      %p172 = scmp.ne.s32.totalorder %s161, %s162
      %p173 = scmp.eq.s32.totalorder %s24, 0
      %p174 = por %p172, %p173
      %p175 = scmp.ne.s32.totalorder %s161, %s162
      %p176 = scmp.eq.s32.totalorder %s25, 7
      %p177 = por %p175, %p176
      %p179 = scmp.ne.s32.totalorder %s162, %s178
      %p180 = scmp.eq.s32.totalorder %s25, 0
      %p181 = por %p179, %p180
      %s182 = ssub.s32 %s26, %s38
      %s183 = ssub.s32 %s27, %s34
      %s184 = sor.u32 %s182, %s183
      %p185 = scmp.eq.s32.totalorder %s184, 0
      %s187 = sadd.s32 %s186, 1
      %s188 = scalar_select %p185, %s186, %s187
      %p191 = pneg %p185
      %p192 = scmp.eq.s32.totalorder %s19, 7
      %p193 = por %p191, %p192
      %p194 = scmp.ne.s32.totalorder %s186, %s189
      %p195 = scmp.eq.s32.totalorder %s19, 0
      %p196 = por %p194, %p195
      %p197 = scmp.ne.s32.totalorder %s186, %s189
      %p198 = scmp.eq.s32.totalorder %s24, 7
      %p199 = por %p197, %p198
      %p200 = scmp.ne.s32.totalorder %s189, %s190
      %p201 = scmp.eq.s32.totalorder %s24, 0
      %p202 = por %p200, %p201
      %p203 = scmp.ne.s32.totalorder %s189, %s190
      %p204 = scmp.eq.s32.totalorder %s25, 7
      %p205 = por %p203, %p204
      %p207 = scmp.ne.s32.totalorder %s190, %s206
      %p208 = scmp.eq.s32.totalorder %s25, 0
      %p209 = por %p207, %p208
      %p210 = scmp.le.s32.totalorder 1, %s19
      %p211 = scmp.lt.s32.totalorder %s19, 9
      %p212 = pnand %p210, %p211
      %p213 = pneg %p212
      // Predicated region
      $region9: #{tpu_custom_call.1} parent=5 // pred_check
        _
      $region10: #{tpu_custom_call.1} parent=5 // pred_check_branch
        %215 = sbr.rel (%p212) target = $region12
      $region11: #{tpu_custom_call.1} parent=5 // pred_region
        %s216 = ssub.s32 %s19, 1
        // Predicated region
        $region13: #{tpu_custom_call.1} parent=11 // pred_check
          %p217 = pneg %p52
        $region14: #{tpu_custom_call.1} parent=11 // pred_check_branch
          %219 = sbr.rel (%p217) target = $region16
        $region15: #{tpu_custom_call.1} parent=11 // pred_region
          _
        $region16: #{tpu_custom_call.1} parent=11 // pred_fallthru
          _
        // Predicated region
        $region17: #{tpu_custom_call.1} parent=11 // pred_check
          %p220 = pneg %p73
        $region18: #{tpu_custom_call.1} parent=11 // pred_check_branch
          %222 = sbr.rel (%p220) target = $region20
        $region19: #{tpu_custom_call.1} parent=11 // pred_region
          _
        $region20: #{tpu_custom_call.1} parent=11 // pred_fallthru
          _
        // Predicated region
        $region21: #{tpu_custom_call.1} parent=11 // pred_check
          %p223 = pneg %p94
        $region22: #{tpu_custom_call.1} parent=11 // pred_check_branch
          %225 = sbr.rel (%p223) target = $region24
        $region23: #{tpu_custom_call.1} parent=11 // pred_region
          %s227 = ssub.s32 64, 64
          %228 = vsyncadd [#allocation6], %s227
          %s230 = sshll.u32 %s2, 4
          %s231 = int_to_ptr.vmem [resolvable:$true] %s230
          %233 = dma.vmem_to_smem %s231, 64, [#allocation4], [#allocation6]
        $region24: #{tpu_custom_call.1} parent=11 // pred_fallthru
          _
      $region12: #{tpu_custom_call.1} parent=5 // pred_fallthru
        _
      %p234 = scmp.lt.s32.totalorder %s19, 8
      // Predicated region
      $region25: #{tpu_custom_call.1} parent=5 // pred_check
        %p235 = pneg %p234
      $region26: #{tpu_custom_call.1} parent=5 // pred_check_branch
        %237 = sbr.rel (%p235) target = $region28
      $region27: #{tpu_custom_call.1} parent=5 // pred_region
        // Predicated region
        $region29: #{tpu_custom_call.1} parent=27 // pred_check
          %p238 = pneg %p114
        $region30: #{tpu_custom_call.1} parent=27 // pred_check_branch
          %240 = sbr.rel (%p238) target = $region32
        $region31: #{tpu_custom_call.1} parent=27 // pred_region
          %p241 = scmp.lt.s32.totalorder %s26, 1
          %s242 = scalar_select %p241, %s26, 1
          %s243 = smul.addr %s242, 16
          %s244 = smul.addr %s243, 8
          %s245 = scalar_lea.vmem %s3, %s244
        $region32: #{tpu_custom_call.1} parent=27 // pred_fallthru
          _
        // Predicated region
        $region33: #{tpu_custom_call.1} parent=27 // pred_check
          %p246 = pneg %p140
        $region34: #{tpu_custom_call.1} parent=27 // pred_check_branch
          %248 = sbr.rel (%p246) target = $region36
        $region35: #{tpu_custom_call.1} parent=27 // pred_region
          %p249 = scmp.lt.s32.totalorder %s26, 1
          %s250 = scalar_select %p249, %s26, 1
          %s251 = smul.addr %s250, 8
          %s252 = scalar_lea.vmem %s4, %s251
        $region36: #{tpu_custom_call.1} parent=27 // pred_fallthru
          _
      $region28: #{tpu_custom_call.1} parent=5 // pred_fallthru
        _
      %p253 = scmp.le.s32.totalorder 1, %s19
      %p254 = scmp.lt.s32.totalorder %s19, 9
      %p255 = pnand %p253, %p254
      %p256 = pneg %p255
      // Predicated region
      $region37: #{tpu_custom_call.1} parent=5 // pred_check
        _
      $region38: #{tpu_custom_call.1} parent=5 // pred_check_branch
        %258 = sbr.rel (%p255) target = $region40
      $region39: #{tpu_custom_call.1} parent=5 // pred_region
        %s259 = ssub.s32 %s19, 1
        // Predicated region
        $region41: #{tpu_custom_call.1} parent=39 // pred_check
          %p260 = pneg %p94
        $region42: #{tpu_custom_call.1} parent=39 // pred_check_branch
          %262 = sbr.rel (%p260) target = $region44
        $region43: #{tpu_custom_call.1} parent=39 // pred_region
          %263 = dma.done [#allocation6], 64
        $region44: #{tpu_custom_call.1} parent=39 // pred_fallthru
          _
        %264 = sfence
        %p265 = pneg %p52
        %p266 = pneg %p49
        %p267 = pneg %p73
        %p268 = pneg %p70
        %p269 = pneg %p94
        %p270 = pneg %p91
        %p271 = scmp.lt.s32.totalorder %s28, 1
        %s272 = scalar_select %p271, %s28, 1
        %s273 = smul.addr %s272, 16
        %s274 = smul.addr %s273, 8
        %s275 = scalar_lea.vmem %s3, %s274
        %p276 = pneg %p120
        %p277 = pneg %p117
        %p278 = scmp.lt.s32.totalorder %s28, 1
        %s279 = scalar_select %p278, %s28, 1
        %s280 = smul.addr %s279, 8
        %s281 = scalar_lea.vmem %s4, %s280
        %p282 = pneg %p146
        %p283 = pneg %p143
        %p284 = pneg %p174
        %p285 = pneg %p171
        %s286 = sand.u32 %s161, 1
        %s287 = scalar_lea.sflag [#allocation5], %s286
        %s288 = sand.u32 %s161, 1
        %s289 = smul.addr %s288, 128
        %s290 = scalar_lea.vmem [#allocation7], %s289
        %p291 = pneg %p202
        %p292 = pneg %p199
        %p293 = scmp.lt.s32.totalorder %s28, 1
        %s294 = scalar_select %p293, %s28, 1
        %p295 = scmp.lt.s32.totalorder %s29, 3
        %s296 = scalar_select %p295, %s29, 3
        %s297 = smul.addr %s294, 4
        %s298 = sadd.s32 %s296, %s297
        %s299 = scalar_lea.vmem %s6, %s298
        %p300 = scmp.lt.s32.totalorder %s28, 1
        %s301 = scalar_select %p300, %s28, 1
        %s302 = smul.addr %s301, 16
        %s303 = smul.addr %s302, 8
        %s304 = scalar_lea.vmem %s3, %s303
        %p305 = scmp.lt.s32.totalorder %s28, 1
        %s306 = scalar_select %p305, %s28, 1
        %s307 = smul.addr %s306, 8
        %s308 = scalar_lea.vmem %s4, %s307
        %p309 = scmp.lt.s32.totalorder %s28, 1
        %s310 = scalar_select %p309, %s28, 1
        %p311 = scmp.lt.s32.totalorder %s29, 3
        %s312 = scalar_select %p311, %s29, 3
        %s313 = smul.addr %s310, 4
        %s314 = sadd.s32 %s312, %s313
        %s315 = scalar_lea.vmem %s6, %s314
        %s317 = sld [smem:[#allocation2]]
        %s318 = sld [smem:[#allocation3]]
        %v319 = vld [vmem:[%s304] sm:$0xff]
        %v320 = vld [vmem:[%s304 + $0x8] sm:$0xff]
        %v321 = vld [vmem:[%s304 + $0x10] sm:$0xff]
        %v322 = vld [vmem:[%s304 + $0x18] sm:$0xff]
        %v323 = vld [vmem:[%s304 + $0x20] sm:$0xff]
        %v324 = vld [vmem:[%s304 + $0x28] sm:$0xff]
        %v325 = vld [vmem:[%s304 + $0x30] sm:$0xff]
        %v326 = vld [vmem:[%s304 + $0x38] sm:$0xff]
        %v327 = vld [vmem:[%s304 + $0x40] sm:$0xff]
        %v328 = vld [vmem:[%s304 + $0x48] sm:$0xff]
        %v329 = vld [vmem:[%s304 + $0x50] sm:$0xff]
        %v330 = vld [vmem:[%s304 + $0x58] sm:$0xff]
        %v331 = vld [vmem:[%s304 + $0x60] sm:$0xff]
        %v332 = vld [vmem:[%s304 + $0x68] sm:$0xff]
        %v333 = vld [vmem:[%s304 + $0x70] sm:$0xff]
        %v334 = vld [vmem:[%s304 + $0x78] sm:$0xff]
        %v335 = vld [vmem:[%s308] sm:$0x1]
        %337 = vset.pattern.permute.xlu0 0
        %338 = vperm.xlu0 %337, %v319
        %v339 = vpop.permute.xlu0 %338
        %342 = vset.pattern.permute.xlu0 0
        %343 = vperm.xlu0 %342, %v320
        %v344 = vpop.permute.xlu0 %343
        %347 = vset.pattern.permute.xlu0 0
        %348 = vperm.xlu0 %347, %v321
        %v349 = vpop.permute.xlu0 %348
        %352 = vset.pattern.permute.xlu0 0
        %353 = vperm.xlu0 %352, %v322
        %v354 = vpop.permute.xlu0 %353
        %357 = vset.pattern.permute.xlu0 0
        %358 = vperm.xlu0 %357, %v323
        %v359 = vpop.permute.xlu0 %358
        %362 = vset.pattern.permute.xlu0 0
        %363 = vperm.xlu0 %362, %v324
        %v364 = vpop.permute.xlu0 %363
        %367 = vset.pattern.permute.xlu0 0
        %368 = vperm.xlu0 %367, %v325
        %v369 = vpop.permute.xlu0 %368
        %372 = vset.pattern.permute.xlu0 0
        %373 = vperm.xlu0 %372, %v326
        %v374 = vpop.permute.xlu0 %373
        %377 = vset.pattern.permute.xlu0 0
        %378 = vperm.xlu0 %377, %v327
        %v379 = vpop.permute.xlu0 %378
        %382 = vset.pattern.permute.xlu0 0
        %383 = vperm.xlu0 %382, %v328
        %v384 = vpop.permute.xlu0 %383
        %387 = vset.pattern.permute.xlu0 0
        %388 = vperm.xlu0 %387, %v329
        %v389 = vpop.permute.xlu0 %388
        %392 = vset.pattern.permute.xlu0 0
        %393 = vperm.xlu0 %392, %v330
        %v394 = vpop.permute.xlu0 %393
        %397 = vset.pattern.permute.xlu0 0
        %398 = vperm.xlu0 %397, %v331
        %v399 = vpop.permute.xlu0 %398
        %402 = vset.pattern.permute.xlu0 0
        %403 = vperm.xlu0 %402, %v332
        %v404 = vpop.permute.xlu0 %403
        %407 = vset.pattern.permute.xlu0 0
        %408 = vperm.xlu0 %407, %v333
        %v409 = vpop.permute.xlu0 %408
        %412 = vset.pattern.permute.xlu0 0
        %413 = vperm.xlu0 %412, %v334
        %v414 = vpop.permute.xlu0 %413
        %v416 = vlaneseq
        %v417 = vshrl.u32 %v416, 7
        %v418 = vsub.s32 0, %v417
        %v419 = vrot.slane %v335, %v418
        %v420 = vsub.f32 %v339, %v419
        %v421 = vsub.f32 %v344, %v419
        %v422 = vsub.f32 %v349, %v419
        %v423 = vsub.f32 %v354, %v419
        %v424 = vsub.f32 %v359, %v419
        %v425 = vsub.f32 %v364, %v419
        %v426 = vsub.f32 %v369, %v419
        %v427 = vsub.f32 %v374, %v419
        %v428 = vsub.f32 %v379, %v419
        %v429 = vsub.f32 %v384, %v419
        %v430 = vsub.f32 %v389, %v419
        %v431 = vsub.f32 %v394, %v419
        %v432 = vsub.f32 %v399, %v419
        %v433 = vsub.f32 %v404, %v419
        %v434 = vsub.f32 %v409, %v419
        %v435 = vsub.f32 %v414, %v419
        %v436 = vmul.f32 %v420, %v420
        %v437 = vmul.f32 %v421, %v421
        %v438 = vmul.f32 %v422, %v422
        %v439 = vmul.f32 %v423, %v423
        %v440 = vmul.f32 %v424, %v424
        %v441 = vmul.f32 %v425, %v425
        %v442 = vmul.f32 %v426, %v426
        %v443 = vmul.f32 %v427, %v427
        %v444 = vmul.f32 %v428, %v428
        %v445 = vmul.f32 %v429, %v429
        %v446 = vmul.f32 %v430, %v430
        %v447 = vmul.f32 %v431, %v431
        %v448 = vmul.f32 %v432, %v432
        %v449 = vmul.f32 %v433, %v433
        %v450 = vmul.f32 %v434, %v434
        %v451 = vmul.f32 %v435, %v435
        %s452 = smul.u32 %s29, 128
        %s453 = sld [smem:[#allocation4 + %s452]]
        %v454 = vstv %s453
        %v455 = vmul.f32 %v436, %v454
        %v456 = vmul.f32 %v437, %v454
        %v457 = vmul.f32 %v438, %v454
        %v458 = vmul.f32 %v439, %v454
        %v459 = vmul.f32 %v440, %v454
        %v460 = vmul.f32 %v441, %v454
        %v461 = vmul.f32 %v442, %v454
        %v462 = vmul.f32 %v443, %v454
        %v463 = vmul.f32 %v444, %v454
        %v464 = vmul.f32 %v445, %v454
        %v465 = vmul.f32 %v446, %v454
        %v466 = vmul.f32 %v447, %v454
        %v467 = vmul.f32 %v448, %v454
        %v468 = vmul.f32 %v449, %v454
        %v469 = vmul.f32 %v450, %v454
        %v470 = vmul.f32 %v451, %v454
        %v471 = vld [vmem:[%s308 + $0x1] sm:$0x1]
        %472 = vset.pattern.permute.xlu0 1
        %473 = vperm.xlu0 %472, %v319
        %v474 = vpop.permute.xlu0 %473
        %476 = vset.pattern.permute.xlu0 1
        %477 = vperm.xlu0 %476, %v320
        %v478 = vpop.permute.xlu0 %477
        %480 = vset.pattern.permute.xlu0 1
        %481 = vperm.xlu0 %480, %v321
        %v482 = vpop.permute.xlu0 %481
        %484 = vset.pattern.permute.xlu0 1
        %485 = vperm.xlu0 %484, %v322
        %v486 = vpop.permute.xlu0 %485
        %488 = vset.pattern.permute.xlu0 1
        %489 = vperm.xlu0 %488, %v323
        %v490 = vpop.permute.xlu0 %489
        %492 = vset.pattern.permute.xlu0 1
        %493 = vperm.xlu0 %492, %v324
        %v494 = vpop.permute.xlu0 %493
        %496 = vset.pattern.permute.xlu0 1
        %497 = vperm.xlu0 %496, %v325
        %v498 = vpop.permute.xlu0 %497
        %500 = vset.pattern.permute.xlu0 1
        %501 = vperm.xlu0 %500, %v326
        %v502 = vpop.permute.xlu0 %501
        %504 = vset.pattern.permute.xlu0 1
        %505 = vperm.xlu0 %504, %v327
        %v506 = vpop.permute.xlu0 %505
        %508 = vset.pattern.permute.xlu0 1
        %509 = vperm.xlu0 %508, %v328
        %v510 = vpop.permute.xlu0 %509
        %512 = vset.pattern.permute.xlu0 1
        %513 = vperm.xlu0 %512, %v329
        %v514 = vpop.permute.xlu0 %513
        %516 = vset.pattern.permute.xlu0 1
        %517 = vperm.xlu0 %516, %v330
        %v518 = vpop.permute.xlu0 %517
        %520 = vset.pattern.permute.xlu0 1
        %521 = vperm.xlu0 %520, %v331
        %v522 = vpop.permute.xlu0 %521
        %524 = vset.pattern.permute.xlu0 1
        %525 = vperm.xlu0 %524, %v332
        %v526 = vpop.permute.xlu0 %525
        %528 = vset.pattern.permute.xlu0 1
        %529 = vperm.xlu0 %528, %v333
        %v530 = vpop.permute.xlu0 %529
        %532 = vset.pattern.permute.xlu0 1
        %533 = vperm.xlu0 %532, %v334
        %v534 = vpop.permute.xlu0 %533
        %v536 = vlaneseq
        %v537 = vshrl.u32 %v536, 7
        %v538 = vsub.s32 0, %v537
        %v539 = vrot.slane %v471, %v538
        %v540 = vsub.f32 %v474, %v539
        %v541 = vsub.f32 %v478, %v539
        %v542 = vsub.f32 %v482, %v539
        %v543 = vsub.f32 %v486, %v539
        %v544 = vsub.f32 %v490, %v539
        %v545 = vsub.f32 %v494, %v539
        %v546 = vsub.f32 %v498, %v539
        %v547 = vsub.f32 %v502, %v539
        %v548 = vsub.f32 %v506, %v539
        %v549 = vsub.f32 %v510, %v539
        %v550 = vsub.f32 %v514, %v539
        %v551 = vsub.f32 %v518, %v539
        %v552 = vsub.f32 %v522, %v539
        %v553 = vsub.f32 %v526, %v539
        %v554 = vsub.f32 %v530, %v539
        %v555 = vsub.f32 %v534, %v539
        %v556 = vmul.f32 %v540, %v540
        %v557 = vmul.f32 %v541, %v541
        %v558 = vmul.f32 %v542, %v542
        %v559 = vmul.f32 %v543, %v543
        %v560 = vmul.f32 %v544, %v544
        %v561 = vmul.f32 %v545, %v545
        %v562 = vmul.f32 %v546, %v546
        %v563 = vmul.f32 %v547, %v547
        %v564 = vmul.f32 %v548, %v548
        %v565 = vmul.f32 %v549, %v549
        %v566 = vmul.f32 %v550, %v550
        %v567 = vmul.f32 %v551, %v551
        %v568 = vmul.f32 %v552, %v552
        %v569 = vmul.f32 %v553, %v553
        %v570 = vmul.f32 %v554, %v554
        %v571 = vmul.f32 %v555, %v555
        %s572 = sadd.s32 %s452, 1
        %s573 = sld [smem:[#allocation4 + %s572]]
        %v574 = vstv %s573
        %v575 = vmul.f32 %v556, %v574
        %v576 = vmul.f32 %v557, %v574
        %v577 = vmul.f32 %v558, %v574
        %v578 = vmul.f32 %v559, %v574
        %v579 = vmul.f32 %v560, %v574
        %v580 = vmul.f32 %v561, %v574
        %v581 = vmul.f32 %v562, %v574
        %v582 = vmul.f32 %v563, %v574
        %v583 = vmul.f32 %v564, %v574
        %v584 = vmul.f32 %v565, %v574
        %v585 = vmul.f32 %v566, %v574
        %v586 = vmul.f32 %v567, %v574
        %v587 = vmul.f32 %v568, %v574
        %v588 = vmul.f32 %v569, %v574
        %v589 = vmul.f32 %v570, %v574
        %v590 = vmul.f32 %v571, %v574
        %v591 = vadd.f32 %v455, %v575
        %v592 = vadd.f32 %v456, %v576
        %v593 = vadd.f32 %v457, %v577
        %v594 = vadd.f32 %v458, %v578
        %v595 = vadd.f32 %v459, %v579
        %v596 = vadd.f32 %v460, %v580
        %v597 = vadd.f32 %v461, %v581
        %v598 = vadd.f32 %v462, %v582
        %v599 = vadd.f32 %v463, %v583
        %v600 = vadd.f32 %v464, %v584
        %v601 = vadd.f32 %v465, %v585
        %v602 = vadd.f32 %v466, %v586
        %v603 = vadd.f32 %v467, %v587
        %v604 = vadd.f32 %v468, %v588
        %v605 = vadd.f32 %v469, %v589
        %v606 = vadd.f32 %v470, %v590
        %v607 = vld [vmem:[%s308 + $0x2] sm:$0x1]
        %608 = vset.pattern.permute.xlu0 2
        %609 = vperm.xlu0 %608, %v319
        %v610 = vpop.permute.xlu0 %609
        %612 = vset.pattern.permute.xlu0 2
        %613 = vperm.xlu0 %612, %v320
        %v614 = vpop.permute.xlu0 %613
        %616 = vset.pattern.permute.xlu0 2
        %617 = vperm.xlu0 %616, %v321
        %v618 = vpop.permute.xlu0 %617
        %620 = vset.pattern.permute.xlu0 2
        %621 = vperm.xlu0 %620, %v322
        %v622 = vpop.permute.xlu0 %621
        %624 = vset.pattern.permute.xlu0 2
        %625 = vperm.xlu0 %624, %v323
        %v626 = vpop.permute.xlu0 %625
        %628 = vset.pattern.permute.xlu0 2
        %629 = vperm.xlu0 %628, %v324
        %v630 = vpop.permute.xlu0 %629
        %632 = vset.pattern.permute.xlu0 2
        %633 = vperm.xlu0 %632, %v325
        %v634 = vpop.permute.xlu0 %633
        %636 = vset.pattern.permute.xlu0 2
        %637 = vperm.xlu0 %636, %v326
        %v638 = vpop.permute.xlu0 %637
        %640 = vset.pattern.permute.xlu0 2
        %641 = vperm.xlu0 %640, %v327
        %v642 = vpop.permute.xlu0 %641
        %644 = vset.pattern.permute.xlu0 2
        %645 = vperm.xlu0 %644, %v328
        %v646 = vpop.permute.xlu0 %645
        %648 = vset.pattern.permute.xlu0 2
        %649 = vperm.xlu0 %648, %v329
        %v650 = vpop.permute.xlu0 %649
        %652 = vset.pattern.permute.xlu0 2
        %653 = vperm.xlu0 %652, %v330
        %v654 = vpop.permute.xlu0 %653
        %656 = vset.pattern.permute.xlu0 2
        %657 = vperm.xlu0 %656, %v331
        %v658 = vpop.permute.xlu0 %657
        %660 = vset.pattern.permute.xlu0 2
        %661 = vperm.xlu0 %660, %v332
        %v662 = vpop.permute.xlu0 %661
        %664 = vset.pattern.permute.xlu0 2
        %665 = vperm.xlu0 %664, %v333
        %v666 = vpop.permute.xlu0 %665
        %668 = vset.pattern.permute.xlu0 2
        %669 = vperm.xlu0 %668, %v334
        %v670 = vpop.permute.xlu0 %669
        %v672 = vlaneseq
        %v673 = vshrl.u32 %v672, 7
        %v674 = vsub.s32 0, %v673
        %v675 = vrot.slane %v607, %v674
        %v676 = vsub.f32 %v610, %v675
        %v677 = vsub.f32 %v614, %v675
        %v678 = vsub.f32 %v618, %v675
        %v679 = vsub.f32 %v622, %v675
        %v680 = vsub.f32 %v626, %v675
        %v681 = vsub.f32 %v630, %v675
        %v682 = vsub.f32 %v634, %v675
        %v683 = vsub.f32 %v638, %v675
        %v684 = vsub.f32 %v642, %v675
        %v685 = vsub.f32 %v646, %v675
        %v686 = vsub.f32 %v650, %v675
        %v687 = vsub.f32 %v654, %v675
        %v688 = vsub.f32 %v658, %v675
        %v689 = vsub.f32 %v662, %v675
        %v690 = vsub.f32 %v666, %v675
        %v691 = vsub.f32 %v670, %v675
        %v692 = vmul.f32 %v676, %v676
        %v693 = vmul.f32 %v677, %v677
        %v694 = vmul.f32 %v678, %v678
        %v695 = vmul.f32 %v679, %v679
        %v696 = vmul.f32 %v680, %v680
        %v697 = vmul.f32 %v681, %v681
        %v698 = vmul.f32 %v682, %v682
        %v699 = vmul.f32 %v683, %v683
        %v700 = vmul.f32 %v684, %v684
        %v701 = vmul.f32 %v685, %v685
        %v702 = vmul.f32 %v686, %v686
        %v703 = vmul.f32 %v687, %v687
        %v704 = vmul.f32 %v688, %v688
        %v705 = vmul.f32 %v689, %v689
        %v706 = vmul.f32 %v690, %v690
        %v707 = vmul.f32 %v691, %v691
        %s708 = sadd.s32 %s452, 2
        %s709 = sld [smem:[#allocation4 + %s708]]
        %v710 = vstv %s709
        %v711 = vmul.f32 %v692, %v710
        %v712 = vmul.f32 %v693, %v710
        %v713 = vmul.f32 %v694, %v710
        %v714 = vmul.f32 %v695, %v710
        %v715 = vmul.f32 %v696, %v710
        %v716 = vmul.f32 %v697, %v710
        %v717 = vmul.f32 %v698, %v710
        %v718 = vmul.f32 %v699, %v710
        %v719 = vmul.f32 %v700, %v710
        %v720 = vmul.f32 %v701, %v710
        %v721 = vmul.f32 %v702, %v710
        %v722 = vmul.f32 %v703, %v710
        %v723 = vmul.f32 %v704, %v710
        %v724 = vmul.f32 %v705, %v710
        %v725 = vmul.f32 %v706, %v710
        %v726 = vmul.f32 %v707, %v710
        %v727 = vadd.f32 %v591, %v711
        %v728 = vadd.f32 %v592, %v712
        %v729 = vadd.f32 %v593, %v713
        %v730 = vadd.f32 %v594, %v714
        %v731 = vadd.f32 %v595, %v715
        %v732 = vadd.f32 %v596, %v716
        %v733 = vadd.f32 %v597, %v717
        %v734 = vadd.f32 %v598, %v718
        %v735 = vadd.f32 %v599, %v719
        %v736 = vadd.f32 %v600, %v720
        %v737 = vadd.f32 %v601, %v721
        %v738 = vadd.f32 %v602, %v722
        %v739 = vadd.f32 %v603, %v723
        %v740 = vadd.f32 %v604, %v724
        %v741 = vadd.f32 %v605, %v725
        %v742 = vadd.f32 %v606, %v726
        %v743 = vstv %s317
        %v744 = vmul.f32 %v727, %v743
        %v745 = vmul.f32 %v728, %v743
        %v746 = vmul.f32 %v729, %v743
        %v747 = vmul.f32 %v730, %v743
        %v748 = vmul.f32 %v731, %v743
        %v749 = vmul.f32 %v732, %v743
        %v750 = vmul.f32 %v733, %v743
        %v751 = vmul.f32 %v734, %v743
        %v752 = vmul.f32 %v735, %v743
        %v753 = vmul.f32 %v736, %v743
        %v754 = vmul.f32 %v737, %v743
        %v755 = vmul.f32 %v738, %v743
        %v756 = vmul.f32 %v739, %v743
        %v757 = vmul.f32 %v740, %v743
        %v758 = vmul.f32 %v741, %v743
        %v759 = vmul.f32 %v742, %v743
        %v760 = vmul.f32 %v744, 1.442695
        %v761 = vpow.pop %v760
        %v762 = vmul.f32 %v745, 1.442695
        %v763 = vpow.pop %v762
        %v764 = vmul.f32 %v746, 1.442695
        %v765 = vpow.pop %v764
        %v766 = vmul.f32 %v747, 1.442695
        %v767 = vpow.pop %v766
        %v768 = vmul.f32 %v748, 1.442695
        %v769 = vpow.pop %v768
        %v770 = vmul.f32 %v749, 1.442695
        %v771 = vpow.pop %v770
        %v772 = vmul.f32 %v750, 1.442695
        %v773 = vpow.pop %v772
        %v774 = vmul.f32 %v751, 1.442695
        %v775 = vpow.pop %v774
        %v776 = vmul.f32 %v752, 1.442695
        %v777 = vpow.pop %v776
        %v778 = vmul.f32 %v753, 1.442695
        %v779 = vpow.pop %v778
        %v780 = vmul.f32 %v754, 1.442695
        %v781 = vpow.pop %v780
        %v782 = vmul.f32 %v755, 1.442695
        %v783 = vpow.pop %v782
        %v784 = vmul.f32 %v756, 1.442695
        %v785 = vpow.pop %v784
        %v786 = vmul.f32 %v757, 1.442695
        %v787 = vpow.pop %v786
        %v788 = vmul.f32 %v758, 1.442695
        %v789 = vpow.pop %v788
        %v790 = vmul.f32 %v759, 1.442695
        %v791 = vpow.pop %v790
        %v792 = vlaneseq
        %v793 = vshrl.u32 %v792, 7
        %v794 = vadd.s32 %v793, 8
        %v795 = vadd.s32 %v793, 16
        %v796 = vadd.s32 %v793, 24
        %v797 = vadd.s32 %v793, 32
        %v798 = vadd.s32 %v793, 40
        %v799 = vadd.s32 %v793, 48
        %v800 = vadd.s32 %v793, 56
        %v801 = vadd.s32 %v793, 64
        %v802 = vadd.s32 %v793, 72
        %v803 = vadd.s32 %v793, 80
        %v804 = vadd.s32 %v793, 88
        %v805 = vadd.s32 %v793, 96
        %v806 = vadd.s32 %v793, 104
        %v807 = vadd.s32 %v793, 112
        %v808 = vadd.s32 %v793, 120
        %v809 = vlaneseq
        %v810 = vand.u32 %v809, 127
        %vm811 = vcmp.ne.s32.totalorder %v793, %v810
        %vm812 = vcmp.ne.s32.totalorder %v794, %v810
        %vm813 = vcmp.ne.s32.totalorder %v795, %v810
        %vm814 = vcmp.ne.s32.totalorder %v796, %v810
        %vm815 = vcmp.ne.s32.totalorder %v797, %v810
        %vm816 = vcmp.ne.s32.totalorder %v798, %v810
        %vm817 = vcmp.ne.s32.totalorder %v799, %v810
        %vm818 = vcmp.ne.s32.totalorder %v800, %v810
        %vm819 = vcmp.ne.s32.totalorder %v801, %v810
        %vm820 = vcmp.ne.s32.totalorder %v802, %v810
        %vm821 = vcmp.ne.s32.totalorder %v803, %v810
        %vm822 = vcmp.ne.s32.totalorder %v804, %v810
        %vm823 = vcmp.ne.s32.totalorder %v805, %v810
        %vm824 = vcmp.ne.s32.totalorder %v806, %v810
        %vm825 = vcmp.ne.s32.totalorder %v807, %v810
        %vm826 = vcmp.ne.s32.totalorder %v808, %v810
        %vm827 = vcmp.lt.s32.totalorder %v793, 12
        %vm828 = vcmp.lt.s32.totalorder %v794, 12
        %vm829 = vcmp.lt.s32.totalorder %v795, 12
        %vm830 = vcmp.lt.s32.totalorder %v796, 12
        %vm831 = vcmp.lt.s32.totalorder %v797, 12
        %vm832 = vcmp.lt.s32.totalorder %v798, 12
        %vm833 = vcmp.lt.s32.totalorder %v799, 12
        %vm834 = vcmp.lt.s32.totalorder %v800, 12
        %vm835 = vcmp.lt.s32.totalorder %v801, 12
        %vm836 = vcmp.lt.s32.totalorder %v802, 12
        %vm837 = vcmp.lt.s32.totalorder %v803, 12
        %vm838 = vcmp.lt.s32.totalorder %v804, 12
        %vm839 = vcmp.lt.s32.totalorder %v805, 12
        %vm840 = vcmp.lt.s32.totalorder %v806, 12
        %vm841 = vcmp.lt.s32.totalorder %v807, 12
        %vm842 = vcmp.lt.s32.totalorder %v808, 12
        %vm843 = vcmp.lt.s32.totalorder %v810, 12
        %vm844 = vmand %vm827, %vm843
        %vm845 = vmand %vm828, %vm843
        %vm846 = vmand %vm829, %vm843
        %vm847 = vmand %vm830, %vm843
        %vm848 = vmand %vm831, %vm843
        %vm849 = vmand %vm832, %vm843
        %vm850 = vmand %vm833, %vm843
        %vm851 = vmand %vm834, %vm843
        %vm852 = vmand %vm835, %vm843
        %vm853 = vmand %vm836, %vm843
        %vm854 = vmand %vm837, %vm843
        %vm855 = vmand %vm838, %vm843
        %vm856 = vmand %vm839, %vm843
        %vm857 = vmand %vm840, %vm843
        %vm858 = vmand %vm841, %vm843
        %vm859 = vmand %vm842, %vm843
        %v860 = vsel %vm844, %v761, 0.0
        %v861 = vsel %vm845, %v763, 0.0
        %v862 = vsel %vm846, %v765, 0.0
        %v863 = vsel %vm847, %v767, 0.0
        %v864 = vsel %vm848, %v769, 0.0
        %v865 = vsel %vm849, %v771, 0.0
        %v866 = vsel %vm850, %v773, 0.0
        %v867 = vsel %vm851, %v775, 0.0
        %v868 = vsel %vm852, %v777, 0.0
        %v869 = vsel %vm853, %v779, 0.0
        %v870 = vsel %vm854, %v781, 0.0
        %v871 = vsel %vm855, %v783, 0.0
        %v872 = vsel %vm856, %v785, 0.0
        %v873 = vsel %vm857, %v787, 0.0
        %v874 = vsel %vm858, %v789, 0.0
        %v875 = vsel %vm859, %v791, 0.0
        %v876 = vstv %s318
        %vm877 = vcmp.ge.f32.partialorder %v860, %v876
        %vm878 = vcmp.ge.f32.partialorder %v861, %v876
        %vm879 = vcmp.ge.f32.partialorder %v862, %v876
        %vm880 = vcmp.ge.f32.partialorder %v863, %v876
        %vm881 = vcmp.ge.f32.partialorder %v864, %v876
        %vm882 = vcmp.ge.f32.partialorder %v865, %v876
        %vm883 = vcmp.ge.f32.partialorder %v866, %v876
        %vm884 = vcmp.ge.f32.partialorder %v867, %v876
        %vm885 = vcmp.ge.f32.partialorder %v868, %v876
        %vm886 = vcmp.ge.f32.partialorder %v869, %v876
        %vm887 = vcmp.ge.f32.partialorder %v870, %v876
        %vm888 = vcmp.ge.f32.partialorder %v871, %v876
        %vm889 = vcmp.ge.f32.partialorder %v872, %v876
        %vm890 = vcmp.ge.f32.partialorder %v873, %v876
        %vm891 = vcmp.ge.f32.partialorder %v874, %v876
        %vm892 = vcmp.ge.f32.partialorder %v875, %v876
        %vm893 = vmand %vm877, %vm811
        %vm894 = vmand %vm878, %vm812
        %vm895 = vmand %vm879, %vm813
        %vm896 = vmand %vm880, %vm814
        %vm897 = vmand %vm881, %vm815
        %vm898 = vmand %vm882, %vm816
        %vm899 = vmand %vm883, %vm817
        %vm900 = vmand %vm884, %vm818
        %vm901 = vmand %vm885, %vm819
        %vm902 = vmand %vm886, %vm820
        %vm903 = vmand %vm887, %vm821
        %vm904 = vmand %vm888, %vm822
        %vm905 = vmand %vm889, %vm823
        %vm906 = vmand %vm890, %vm824
        %vm907 = vmand %vm891, %vm825
        %vm908 = vmand %vm892, %vm826
        %vm909 = vmand %vm893, %vm844
        %vm910 = vmand %vm894, %vm845
        %vm911 = vmand %vm895, %vm846
        %vm912 = vmand %vm896, %vm847
        %vm913 = vmand %vm897, %vm848
        %vm914 = vmand %vm898, %vm849
        %vm915 = vmand %vm899, %vm850
        %vm916 = vmand %vm900, %vm851
        %vm917 = vmand %vm901, %vm852
        %vm918 = vmand %vm902, %vm853
        %vm919 = vmand %vm903, %vm854
        %vm920 = vmand %vm904, %vm855
        %vm921 = vmand %vm905, %vm856
        %vm922 = vmand %vm906, %vm857
        %vm923 = vmand %vm907, %vm858
        %vm924 = vmand %vm908, %vm859
        %925 = vst [vmem:[%s290] sm:$0xff] %v860
        %926 = vst [vmem:[%s290 + $0x8] sm:$0xff] %v861
        %927 = vst [vmem:[%s290 + $0x10] sm:$0xff] %v862
        %928 = vst [vmem:[%s290 + $0x18] sm:$0xff] %v863
        %929 = vst [vmem:[%s290 + $0x20] sm:$0xff] %v864
        %930 = vst [vmem:[%s290 + $0x28] sm:$0xff] %v865
        %931 = vst [vmem:[%s290 + $0x30] sm:$0xff] %v866
        %932 = vst [vmem:[%s290 + $0x38] sm:$0xff] %v867
        %933 = vst [vmem:[%s290 + $0x40] sm:$0xff] %v868
        %934 = vst [vmem:[%s290 + $0x48] sm:$0xff] %v869
        %935 = vst [vmem:[%s290 + $0x50] sm:$0xff] %v870
        %936 = vst [vmem:[%s290 + $0x58] sm:$0xff] %v871
        %937 = vst [vmem:[%s290 + $0x60] sm:$0xff] %v872
        %938 = vst [vmem:[%s290 + $0x68] sm:$0xff] %v873
        %939 = vst [vmem:[%s290 + $0x70] sm:$0xff] %v874
        %940 = vst [vmem:[%s290 + $0x78] sm:$0xff] %v875
        %v941 = vsel %vm909, 1, 0
        %v942 = vsel %vm910, 1, 0
        %v943 = vsel %vm911, 1, 0
        %v944 = vsel %vm912, 1, 0
        %v945 = vsel %vm913, 1, 0
        %v946 = vsel %vm914, 1, 0
        %v947 = vsel %vm915, 1, 0
        %v948 = vsel %vm916, 1, 0
        %v949 = vsel %vm917, 1, 0
        %v950 = vsel %vm918, 1, 0
        %v951 = vsel %vm919, 1, 0
        %v952 = vsel %vm920, 1, 0
        %v953 = vsel %vm921, 1, 0
        %v954 = vsel %vm922, 1, 0
        %v955 = vsel %vm923, 1, 0
        %v956 = vsel %vm924, 1, 0
        %v957 = vcvt.s32.f32 %v941
        %v958 = vcvt.s32.f32 %v942
        %v959 = vcvt.s32.f32 %v943
        %v960 = vcvt.s32.f32 %v944
        %v961 = vcvt.s32.f32 %v945
        %v962 = vcvt.s32.f32 %v946
        %v963 = vcvt.s32.f32 %v947
        %v964 = vcvt.s32.f32 %v948
        %v965 = vcvt.s32.f32 %v949
        %v966 = vcvt.s32.f32 %v950
        %v967 = vcvt.s32.f32 %v951
        %v968 = vcvt.s32.f32 %v952
        %v969 = vcvt.s32.f32 %v953
        %v970 = vcvt.s32.f32 %v954
        %v971 = vcvt.s32.f32 %v955
        %v972 = vcvt.s32.f32 %v956
        %v973 = vpack.c.bf16 %v958, %v957
        %v974 = vpack.c.bf16 %v960, %v959
        %v975 = vpack.c.bf16 %v962, %v961
        %v976 = vpack.c.bf16 %v964, %v963
        %v977 = vpack.c.bf16 %v966, %v965
        %v978 = vpack.c.bf16 %v968, %v967
        %v979 = vpack.c.bf16 %v970, %v969
        %v980 = vpack.c.bf16 %v972, %v971
        %981 = vmatprep.subr.bf16.mxu0 0
        %982 = vmatpush1.bf16.msra.mxu0 %v980
        %983 = vmatprep.subr.bf16.mxu0 0
        %984 = vmatpush1.bf16.msra.mxu0 %v979
        %985 = vmatprep.subr.bf16.mxu0 0
        %986 = vmatpush1.bf16.msra.mxu0 %v978
        %987 = vmatprep.subr.bf16.mxu0 0
        %988 = vmatpush1.bf16.msra.mxu0 %v977
        %989 = vmatprep.subr.bf16.mxu0 0
        %990 = vmatpush1.bf16.msra.mxu0 %v976
        %991 = vmatprep.subr.bf16.mxu0 0
        %992 = vmatpush1.bf16.msra.mxu0 %v975
        %993 = vmatprep.subr.bf16.mxu0 0
        %994 = vmatpush1.bf16.msra.mxu0 %v974
        %995 = vmatprep.subr.bf16.mxu0 0
        %996 = vmatpush1.bf16.msra.mxu0 %v973
        %997 = vmatprep.subr.bf16.mxu0 0
        %998 = vmatpush2.bf16.msra.mxu0 0
        %999 = vmatprep.subr.bf16.mxu0 0
        %1000 = vmatpush2.bf16.msra.mxu0 0
        %1001 = vmatprep.subr.bf16.mxu0 0
        %1002 = vmatpush2.bf16.msra.mxu0 0
        %1003 = vmatprep.subr.bf16.mxu0 0
        %1004 = vmatpush2.bf16.msra.mxu0 0
        %1005 = vmatprep.subr.bf16.mxu0 0
        %1006 = vmatpush2.bf16.msra.mxu0 0
        %1007 = vmatprep.subr.bf16.mxu0 0
        %1008 = vmatpush2.bf16.msra.mxu0 0
        %1009 = vmatprep.subr.bf16.mxu0 0
        %1010 = vmatpush2.bf16.msra.mxu0 0
        %1011 = vmatprep.subr.bf16.mxu0 0
        %1012 = vmatpush2.bf16.msra.mxu0 0
        %1013 = vmatprep.mubr.bf16.mxu0 0
        %1014 = vmatmul.mubr.bf16.gmra.mxu0 %v973
        %v1015 = vpop.f32.mrf.mxu0
        %v1016 = vadd.f32 0.0, %v1015
        %v1017 = vpop.f32.mrf.mxu0
        %v1018 = vpop.f32.mrf.mxu0
        %v1019 = vadd.f32 0.0, %v1018
        %v1020 = vpop.f32.mrf.mxu0
        %1021 = vmatprep.mubr.bf16.mxu0 0
        %1022 = vmatmul.mubr.bf16.gmra.mxu0 %v974
        %v1023 = vpop.f32.mrf.mxu0
        %v1024 = vadd.f32 0.0, %v1023
        %v1025 = vpop.f32.mrf.mxu0
        %v1026 = vpop.f32.mrf.mxu0
        %v1027 = vadd.f32 0.0, %v1026
        %v1028 = vpop.f32.mrf.mxu0
        %1029 = vmatprep.mubr.bf16.mxu0 0
        %1030 = vmatmul.mubr.bf16.gmra.mxu0 %v975
        %v1031 = vpop.f32.mrf.mxu0
        %v1032 = vadd.f32 0.0, %v1031
        %v1033 = vpop.f32.mrf.mxu0
        %v1034 = vpop.f32.mrf.mxu0
        %v1035 = vadd.f32 0.0, %v1034
        %v1036 = vpop.f32.mrf.mxu0
        %1037 = vmatprep.mubr.bf16.mxu0 0
        %1038 = vmatmul.mubr.bf16.gmra.mxu0 %v976
        %v1039 = vpop.f32.mrf.mxu0
        %v1040 = vadd.f32 0.0, %v1039
        %v1041 = vpop.f32.mrf.mxu0
        %v1042 = vpop.f32.mrf.mxu0
        %v1043 = vadd.f32 0.0, %v1042
        %v1044 = vpop.f32.mrf.mxu0
        %1045 = vmatprep.mubr.bf16.mxu0 0
        %1046 = vmatmul.mubr.bf16.gmra.mxu0 %v977
        %v1047 = vpop.f32.mrf.mxu0
        %v1048 = vadd.f32 0.0, %v1047
        %v1049 = vpop.f32.mrf.mxu0
        %v1050 = vpop.f32.mrf.mxu0
        %v1051 = vadd.f32 0.0, %v1050
        %v1052 = vpop.f32.mrf.mxu0
        %1053 = vmatprep.mubr.bf16.mxu0 0
        %1054 = vmatmul.mubr.bf16.gmra.mxu0 %v978
        %v1055 = vpop.f32.mrf.mxu0
        %v1056 = vadd.f32 0.0, %v1055
        %v1057 = vpop.f32.mrf.mxu0
        %v1058 = vpop.f32.mrf.mxu0
        %v1059 = vadd.f32 0.0, %v1058
        %v1060 = vpop.f32.mrf.mxu0
        %1061 = vmatprep.mubr.bf16.mxu0 0
        %1062 = vmatmul.mubr.bf16.gmra.mxu0 %v979
        %v1063 = vpop.f32.mrf.mxu0
        %v1064 = vadd.f32 0.0, %v1063
        %v1065 = vpop.f32.mrf.mxu0
        %v1066 = vpop.f32.mrf.mxu0
        %v1067 = vadd.f32 0.0, %v1066
        %v1068 = vpop.f32.mrf.mxu0
        %1069 = vmatprep.mubr.bf16.mxu0 0
        %1070 = vmatmul.mubr.bf16.gmra.mxu0 %v980
        %v1071 = vpop.f32.mrf.mxu0
        %v1072 = vadd.f32 0.0, %v1071
        %v1073 = vpop.f32.mrf.mxu0
        %v1074 = vpop.f32.mrf.mxu0
        %v1075 = vadd.f32 0.0, %v1074
        %v1076 = vpop.f32.mrf.mxu0
        %1077 = vdwg.mxu0
        %v1078 = vsel %vm909, %v1016, 0.0
        %v1079 = vsel %vm910, %v1019, 0.0
        %v1080 = vsel %vm911, %v1024, 0.0
        %v1081 = vsel %vm912, %v1027, 0.0
        %v1082 = vsel %vm913, %v1032, 0.0
        %v1083 = vsel %vm914, %v1035, 0.0
        %v1084 = vsel %vm915, %v1040, 0.0
        %v1085 = vsel %vm916, %v1043, 0.0
        %v1086 = vsel %vm917, %v1048, 0.0
        %v1087 = vsel %vm918, %v1051, 0.0
        %v1088 = vsel %vm919, %v1056, 0.0
        %v1089 = vsel %vm920, %v1059, 0.0
        %v1090 = vsel %vm921, %v1064, 0.0
        %v1091 = vsel %vm922, %v1067, 0.0
        %v1092 = vsel %vm923, %v1072, 0.0
        %v1093 = vsel %vm924, %v1075, 0.0
        %v1094 = vadd.f32 %v1078, %v1079
        %v1095 = vadd.f32 %v1094, %v1080
        %v1096 = vadd.f32 %v1095, %v1081
        %v1097 = vadd.f32 %v1096, %v1082
        %v1098 = vadd.f32 %v1097, %v1083
        %v1099 = vadd.f32 %v1098, %v1084
        %v1100 = vadd.f32 %v1099, %v1085
        %v1101 = vadd.f32 %v1100, %v1086
        %v1102 = vadd.f32 %v1101, %v1087
        %v1103 = vadd.f32 %v1102, %v1088
        %v1104 = vadd.f32 %v1103, %v1089
        %v1105 = vadd.f32 %v1104, %v1090
        %v1106 = vadd.f32 %v1105, %v1091
        %v1107 = vadd.f32 %v1106, %v1092
        %v1108 = vadd.f32 %v1107, %v1093
        %1109 = vadd.xlane.f32.xlu0 %v1108
        %v1110 = vpop.xlane.xlu0 %1109
        %v1111 = vrot.slane %v1110, 4
        %v1112 = vadd.f32 %v1110, %v1111
        %v1113 = vrot.slane %v1112, 2
        %v1114 = vadd.f32 %v1112, %v1113
        %v1115 = vrot.slane %v1114, 1
        %v1116 = vadd.f32 %v1114, %v1115
        %s1117 = vtos %v1116
        %v1118 = vstv %s1117
        %v1119 = vmul.f32 %v1118, 0.16666667
        %vm1120 = vcmask 0
        %1121 = vst.msk [vmem:[%s315] sm:$0x1] %vm1120, %v1119
        %s1122 = sand.u32 %s161, 1
        %s1123 = scalar_lea.sflag [#allocation5], %s1122
        %s1124 = sand.u32 %s161, 1
        %s1125 = smul.addr %s1124, 128
        %s1126 = scalar_lea.vmem [#allocation7], %s1125
        %p1127 = scmp.lt.s32.totalorder %s28, 1
        %s1128 = scalar_select %p1127, %s28, 1
        %p1129 = scmp.lt.s32.totalorder %s29, 3
        %s1130 = scalar_select %p1129, %s29, 3
        %s1131 = smul.addr %s1128, 4
        %s1132 = sadd.s32 %s1130, %s1131
        %s1133 = scalar_lea.vmem %s6, %s1132
        // Predicated region
        $region45: #{tpu_custom_call.1} parent=39 // pred_check
          %p1134 = pneg %p171
        $region46: #{tpu_custom_call.1} parent=39 // pred_check_branch
          %1136 = sbr.rel (%p1134) target = $region48
        $region47: #{tpu_custom_call.1} parent=39 // pred_region
          %s1138 = ssub.s32 2048, 2048
          %1139 = vsyncadd %s1123, %s1138
          %s1140 = smul.addr %s29, 16
          %s1141 = smul.addr %s28, 64
          %s1142 = sadd.s32 %s1140, %s1141
          %s1143 = smul.addr %s1142, 128
          %s1144 = scalar_lea.hbm %s5, %s1143
          %s1145 = sshll.u32 %s1126, 4
          %s1146 = int_to_ptr.vmem [resolvable:$true] %s1145
          %1151 = dma.vmem_to_hbm [thread:$0]  %s1146, 2048, %s1144, %s1123, 128, 128, 8
        $region48: #{tpu_custom_call.1} parent=39 // pred_fallthru
          _
        // Predicated region
        $region49: #{tpu_custom_call.1} parent=39 // pred_check
          %p1152 = pneg %p199
        $region50: #{tpu_custom_call.1} parent=39 // pred_check_branch
          %1154 = sbr.rel (%p1152) target = $region52
        $region51: #{tpu_custom_call.1} parent=39 // pred_region
          _
        $region52: #{tpu_custom_call.1} parent=39 // pred_fallthru
          _
      $region40: #{tpu_custom_call.1} parent=5 // pred_fallthru
        _
      %p1155 = scmp.le.s32.totalorder 2, %s19
      // Predicated region
      $region53: #{tpu_custom_call.1} parent=5 // pred_check
        %p1156 = pneg %p1155
      $region54: #{tpu_custom_call.1} parent=5 // pred_check_branch
        %1158 = sbr.rel (%p1156) target = $region56
      $region55: #{tpu_custom_call.1} parent=5 // pred_region
        %s1159 = ssub.s32 %s19, 2
        // Predicated region
        $region57: #{tpu_custom_call.1} parent=55 // pred_check
          %p1160 = pneg %p177
        $region58: #{tpu_custom_call.1} parent=55 // pred_check_branch
          %1162 = sbr.rel (%p1160) target = $region60
        $region59: #{tpu_custom_call.1} parent=55 // pred_region
          %s1163 = sand.u32 %s162, 1
          %s1164 = scalar_lea.sflag [#allocation5], %s1163
          %s1165 = sand.u32 %s162, 1
          %s1166 = smul.addr %s1165, 128
          %s1167 = scalar_lea.vmem [#allocation7], %s1166
          %1168 = dma.done %s1164, 2048
        $region60: #{tpu_custom_call.1} parent=55 // pred_fallthru
          _
        // Predicated region
        $region61: #{tpu_custom_call.1} parent=55 // pred_check
          %p1169 = pneg %p205
        $region62: #{tpu_custom_call.1} parent=55 // pred_check_branch
          %1171 = sbr.rel (%p1169) target = $region64
        $region63: #{tpu_custom_call.1} parent=55 // pred_region
          %p1172 = scmp.lt.s32.totalorder %s30, 1
          %s1173 = scalar_select %p1172, %s30, 1
          %p1174 = scmp.lt.s32.totalorder %s31, 3
          %s1175 = scalar_select %p1174, %s31, 3
          %s1176 = smul.addr %s1173, 4
          %s1177 = sadd.s32 %s1175, %s1176
          %s1178 = scalar_lea.vmem %s6, %s1177
        $region64: #{tpu_custom_call.1} parent=55 // pred_fallthru
          _
      $region56: #{tpu_custom_call.1} parent=5 // pred_fallthru
        _
    $region6: #{tpu_custom_call.1} parent=1 // loop_footer
      %s23 = sadd.s32 1, %s19
    $region7: #{tpu_custom_call.1} parent=1 // loop_footer_branch
      %18 = sbr.rel target = $region3
    $region8: #{tpu_custom_call.1} parent=1 // loop_exit
      _
    %1179 = vsyncpa [#allocation5], 1
    %s1180 = scalar_lea.sflag [#allocation5], 1
    %1181 = vsyncpa %s1180, 1
    %1182 = vsyncpa [#allocation6], 1
    %s1183 = scalar_lea.sflag [#allocation6], 1
    %1184 = vsyncpa %s1183, 1

</llo_original>
